<compile_context>
chip_gen: v5e
topology: v5e:2x2
jax: 0.10.0
libtpu: 0.0.40
codegen_flags: <defaults>
</compile_context>

<pallas_src>
import jax
import jax.numpy as jnp
from jax.experimental import pallas as pl
from jax.experimental.pallas import tpu as pltpu


def _recommender_kernel(uf_ref, mf_ref, a_ref, p_ref, o_ref):
    # uf_ref/mf_ref: [TB, F] streamed feature tiles (any dtype; cast to f32).
    # a_ref:         [F, F] resident fused weight matrix (f32).
    # p_ref:         [3, F] resident rows [c; d; const*onehot0] (f32).
    # o_ref:         [1, TB] lane-dense output row.
    u = uf_ref[...].astype(jnp.float32)
    m = mf_ref[...].astype(jnp.float32)

    ua = jnp.dot(u, a_ref[...], preferred_element_type=jnp.float32)  # [TB, F]

    c = p_ref[0:1, :]   # [1, F]
    d = p_ref[1:2, :]   # [1, F]
    e = p_ref[2:3, :]   # [1, F], only lane 0 nonzero (= bu.bm)

    combined = (ua + d) * m + u * c + e                 # [TB, F]
    scores = jnp.sum(combined, axis=1)                  # [TB] (row-local)
    o_ref[...] = scores[None, :]                        # lane-dense [1, TB]


def _round_down(x, m):
    return (x // m) * m


def content_based_recommender(user_features, movie_features, wu, bu, wm, bm,
                              *, block_b=2048):
    """user_features, movie_features: [B, F] (f32 or bf16; bf16 is exact for
       {0,1} multi-hot and halves HBM traffic).
       wu, wm: [F, D] f32 (transposed vs torch's [D, F]); bu, bm: [D] f32.
       Returns [B] f32 scores."""
    B, F = user_features.shape
    D = wu.shape[1]
    assert movie_features.shape == (B, F)
    assert wu.shape == (F, D) and wm.shape == (F, D)
    assert bu.shape == (D,) and bm.shape == (D,)

    # Tiny weight-time precompute (exact algebraic refactoring of the module).
    wu = wu.astype(jnp.float32)
    wm = wm.astype(jnp.float32)
    bu = bu.astype(jnp.float32)
    bm = bm.astype(jnp.float32)
    A = jnp.dot(wu, wm.T, preferred_element_type=jnp.float32)       # [F, F]
    c = jnp.dot(wu, bm, preferred_element_type=jnp.float32)         # [F]
    d = jnp.dot(wm, bu, preferred_element_type=jnp.float32)         # [F]
    const = jnp.dot(bu, bm, preferred_element_type=jnp.float32)     # scalar
    e = jnp.zeros((F,), jnp.float32).at[0].set(const)               # one-hot row
    P = jnp.stack([c, d, e], axis=0)                                 # [3, F]

    # Batch tile: multiple of 128 (lane-dense output, unmasked stores), never
    # larger than the array (the last grid tile may be a partial block).
    if B >= 128:
        TB = max(128, _round_down(min(block_b, B), 128))
    else:
        TB = B                      # single partial-lane tile; fine for tiny B
    n_tiles = pl.cdiv(B, TB)

    feat_bytes = user_features.dtype.itemsize
    cost = pl.CostEstimate(
        flops=n_tiles * TB * (2 * F * F + 6 * F),
        transcendentals=0,
        bytes_accessed=2 * B * F * feat_bytes + (F * F + 3 * F) * 4
                       + n_tiles * TB * 4,
    )

    out = pl.pallas_call(
        _recommender_kernel,
        out_shape=jax.ShapeDtypeStruct((n_tiles, TB), jnp.float32),
        grid_spec=pltpu.PrefetchScalarGridSpec(
            num_scalar_prefetch=0,
            grid=(n_tiles,),
            in_specs=[
                pl.BlockSpec((TB, F), lambda i: (i, 0)),   # streamed user tile
                pl.BlockSpec((TB, F), lambda i: (i, 0)),   # streamed movie tile
                pl.BlockSpec((F, F), lambda i: (0, 0)),    # resident A
                pl.BlockSpec((3, F), lambda i: (0, 0)),    # resident [c; d; e]
            ],
            out_specs=pl.BlockSpec((1, TB), lambda i: (i, 0)),
        ),
        compiler_params=pltpu.CompilerParams(
            dimension_semantics=("parallel",),
        ),
        cost_estimate=cost,
    )(user_features, movie_features, A, P)

    # (n_tiles, TB) lane-dense rows -> flat -> drop the overhang rows.
    return out.reshape(n_tiles * TB)[:B]


def init_params(key, num_features, embedding_dim):
    """Deterministic init mimicking nn.Linear's U(-1/sqrt(F), 1/sqrt(F))."""
    k = jax.random.split(key, 4)
    bound = 1.0 / jnp.sqrt(jnp.float32(num_features))
    wu = jax.random.uniform(k[0], (num_features, embedding_dim), jnp.float32, -bound, bound)
    bu = jax.random.uniform(k[1], (embedding_dim,), jnp.float32, -bound, bound)
    wm = jax.random.uniform(k[2], (num_features, embedding_dim), jnp.float32, -bound, bound)
    bm = jax.random.uniform(k[3], (embedding_dim,), jnp.float32, -bound, bound)
    return wu, bu, wm, bm


if __name__ == "__main__":
    NUM_FEATURES = 16    # e.g. 16 genres (multi-hot)
    EMBEDDING_DIM = 50

    key = jax.random.PRNGKey(0)
    k_user, k_movie, k_params = jax.random.split(key, 3)
    wu, bu, wm, bm = init_params(k_params, NUM_FEATURES, EMBEDDING_DIM)

    def reference(uf, mf):
        # Straight two-Linear reference (module semantics), in f32.
        uvec = uf.astype(jnp.float32) @ wu + bu
        mvec = mf.astype(jnp.float32) @ wm + bm
        return jnp.sum(uvec * mvec, axis=1)

    # Small smoke test (single tiny tile, matches the module's toy shapes).
    B = 8
    uf = (jax.random.uniform(k_user, (B, NUM_FEATURES)) > 0.5).astype(jnp.bfloat16)
    mf = (jax.random.uniform(k_movie, (B, NUM_FEATURES)) > 0.5).astype(jnp.bfloat16)
    out = jax.block_until_ready(content_based_recommender(uf, mf, wu, bu, wm, bm))
    assert out.shape == (B,)
    assert jnp.allclose(out, reference(uf, mf), atol=5e-4, rtol=5e-4)

    # Larger, non-multiple batch: multi-tile "parallel" grid with an
    # overhanging (unpadded) last tile, bf16 multi-hot features.
    B2 = 1000
    k_u2, k_m2 = jax.random.split(jax.random.PRNGKey(1))
    uf2 = (jax.random.uniform(k_u2, (B2, NUM_FEATURES)) > 0.5).astype(jnp.bfloat16)
    mf2 = (jax.random.uniform(k_m2, (B2, NUM_FEATURES)) > 0.5).astype(jnp.bfloat16)
    out2 = jax.block_until_ready(content_based_recommender(uf2, mf2, wu, bu, wm, bm))
    assert out2.shape == (B2,)
    assert jnp.allclose(out2, reference(uf2, mf2), atol=5e-4, rtol=5e-4)

    # f32-feature path (no bf16 producer) also supported, same kernel.
    out3 = jax.block_until_ready(
        content_based_recommender(uf2.astype(jnp.float32), mf2.astype(jnp.float32),
                                  wu, bu, wm, bm))
    assert jnp.allclose(out3, reference(uf2, mf2), atol=5e-4, rtol=5e-4)

    print("KERNEL_OK")
</pallas_src>

<mosaic_0001>
module attributes {stable_mosaic.version = 11 : i64} {
  func.func @_recommender_kernel(%arg0: i32, %arg1: memref<8x16xbf16, #tpu.memory_space<vmem>>, %arg2: memref<8x16xbf16, #tpu.memory_space<vmem>>, %arg3: memref<16x16xf32, #tpu.memory_space<vmem>>, %arg4: memref<3x16xf32, #tpu.memory_space<vmem>>, %arg5: memref<1x8xf32, #tpu.memory_space<vmem>>) attributes {dimension_semantics = [#tpu.dimension_semantics<parallel>], iteration_bounds = array<i64: 1>, scalar_prefetch = 0 : i64, scratch_operands = 0 : i64, tpu.core_type = #tpu.core_type<tc>, window_params = [{transform_indices = @transform_0, window_bounds = array<i64: 8, 16>}, {transform_indices = @transform_1, window_bounds = array<i64: 8, 16>}, {pipeline_mode = #tpu.pipeline_mode<synchronous>, transform_indices = @transform_2, window_bounds = array<i64: 16, 16>}, {pipeline_mode = #tpu.pipeline_mode<synchronous>, transform_indices = @transform_3, window_bounds = array<i64: 3, 16>}, {transform_indices = @transform_4, window_bounds = array<i64: 1, 8>}]} {
    %c0 = arith.constant 0 : index
    %c0_0 = arith.constant 0 : index
    %0 = vector.load %arg1[%c0, %c0_0] : memref<8x16xbf16, #tpu.memory_space<vmem>>, vector<8x16xbf16>
    %1 = arith.extf %0 : vector<8x16xbf16> to vector<8x16xf32>
    %c0_1 = arith.constant 0 : index
    %c0_2 = arith.constant 0 : index
    %2 = vector.load %arg2[%c0_1, %c0_2] : memref<8x16xbf16, #tpu.memory_space<vmem>>, vector<8x16xbf16>
    %3 = arith.extf %2 : vector<8x16xbf16> to vector<8x16xf32>
    %c0_3 = arith.constant 0 : index
    %c0_4 = arith.constant 0 : index
    %4 = vector.load %arg3[%c0_3, %c0_4] : memref<16x16xf32, #tpu.memory_space<vmem>>, vector<16x16xf32>
    %cst = arith.constant dense<0.000000e+00> : vector<8x16xf32>
    %5 = tpu.matmul %1, %4, %cst {dimension_numbers = #tpu.dot_dimension_numbers<[1], [0], [0], [1], [0, 0, 1, 1], [], []>} : vector<8x16xf32>, vector<16x16xf32>, vector<8x16xf32> -> vector<8x16xf32>
    %c0_5 = arith.constant 0 : index
    %c0_6 = arith.constant 0 : index
    %6 = vector.load %arg4[%c0_5, %c0_6] : memref<3x16xf32, #tpu.memory_space<vmem>>, vector<1x16xf32>
    %c1 = arith.constant 1 : index
    %c0_7 = arith.constant 0 : index
    %7 = vector.load %arg4[%c1, %c0_7] : memref<3x16xf32, #tpu.memory_space<vmem>>, vector<1x16xf32>
    %c2 = arith.constant 2 : index
    %c0_8 = arith.constant 0 : index
    %8 = vector.load %arg4[%c2, %c0_8] : memref<3x16xf32, #tpu.memory_space<vmem>>, vector<1x16xf32>
    %9 = vector.broadcast %7 : vector<1x16xf32> to vector<8x16xf32>
    %10 = arith.addf %5, %9 : vector<8x16xf32>
    %11 = arith.mulf %10, %3 : vector<8x16xf32>
    %12 = vector.broadcast %6 : vector<1x16xf32> to vector<8x16xf32>
    %13 = arith.mulf %1, %12 : vector<8x16xf32>
    %14 = arith.addf %11, %13 : vector<8x16xf32>
    %15 = vector.broadcast %8 : vector<1x16xf32> to vector<8x16xf32>
    %16 = arith.addf %14, %15 : vector<8x16xf32>
    %cst_9 = arith.constant dense<0.000000e+00> : vector<8xf32>
    %17 = vector.multi_reduction <add>, %16, %cst_9 [1] : vector<8x16xf32> to vector<8xf32>
    %18 = vector.shape_cast %17 : vector<8xf32> to vector<1x8xf32>
    %c0_10 = arith.constant 0 : index
    %c0_11 = arith.constant 0 : index
    %19 = vector.load %arg5[%c0_10, %c0_11] : memref<1x8xf32, #tpu.memory_space<vmem>>, vector<1x8xf32>
    tpu.vector_store %arg5[%c0_10, %c0_11], %18 {strides = array<i32>} : memref<1x8xf32, #tpu.memory_space<vmem>>, vector<1x8xf32>,
    return
  }
  func.func @transform_0(%arg0: i32) -> (i32, i32) {
    %c0_i32 = arith.constant 0 : i32
    %c0_i32_0 = arith.constant 0 : i32
    return %arg0, %c0_i32 : i32, i32
  }
  func.func @transform_1(%arg0: i32) -> (i32, i32) {
    %c0_i32 = arith.constant 0 : i32
    %c0_i32_0 = arith.constant 0 : i32
    return %arg0, %c0_i32 : i32, i32
  }
  func.func @transform_2(%arg0: i32) -> (i32, i32) {
    %c0_i32 = arith.constant 0 : i32
    %c0_i32_0 = arith.constant 0 : i32
    %c0_i32_1 = arith.constant 0 : i32
    return %c0_i32, %c0_i32_0 : i32, i32
  }
  func.func @transform_3(%arg0: i32) -> (i32, i32) {
    %c0_i32 = arith.constant 0 : i32
    %c0_i32_0 = arith.constant 0 : i32
    %c0_i32_1 = arith.constant 0 : i32
    return %c0_i32, %c0_i32_0 : i32, i32
  }
  func.func @transform_4(%arg0: i32) -> (i32, i32) {
    %c0_i32 = arith.constant 0 : i32
    %c0_i32_0 = arith.constant 0 : i32
    return %arg0, %c0_i32 : i32, i32
  }
}

</mosaic_0001>

<llo_original>
// kernel: tpu_custom_call.1
$region0: #{tpu_custom_call.1}
  #allocation0 [shape = 'u32[]', space=smem, size = 0x4, offset = 0x4, fixed_abs, tag = 'smem constant byte address 0x4 - core index']
  #allocation1 [shape = 'u32[72,128]{1,0:T(1,128)}', space=vmem, size = 0x9000, scoped, tag = 'internal scratch']
  %s0 = inlined_call_operand.hbm [shape: bf16[8,16], index: 0, kind: input, shape index: {}]
  %s1 = inlined_call_operand.hbm [shape: bf16[8,16], index: 1, kind: input, shape index: {}]
  %s2 = inlined_call_operand.hbm [shape: f32[16,16], index: 2, kind: input, shape index: {}]
  %s3 = inlined_call_operand.hbm [shape: f32[3,16], index: 3, kind: input, shape index: {}]
  %s4 = inlined_call_operand.hbm [shape: f32[1,8], index: 4, kind: output, shape index: {}]
  %s5 = sld [smem:[#allocation0]]
  $region42: #{tpu_custom_call.1} parent=0
    _
  %s7 = ssub.s32 1, %s5
  %s8 = scalar_select 0, %s7, %s5
  $region1: #{tpu_custom_call.1} parent=0
    #allocation2 [shape = 'u8[2048]{0}', space=vmem, size = 0x800, scoped, tag = 'input window, operand 0, single buffered']
    #allocation3 [shape = 's32[1]{0}', space=sflag, size = 0x4, scoped, tag = 'scoped memory for tpu_custom_call.1']
    #allocation4 [shape = 's32[1]{0}', space=sflag, size = 0x4, scoped, tag = 'scoped memory for tpu_custom_call.1']
    #allocation5 [shape = 'u8[2048]{0}', space=vmem, size = 0x800, scoped, tag = 'input window, operand 1, single buffered']
    #allocation6 [shape = 's32[1]{0}', space=sflag, size = 0x4, scoped, tag = 'scoped memory for tpu_custom_call.1']
    #allocation7 [shape = 'u8[8192]{0}', space=vmem, size = 0x2000, scoped, tag = 'input window, operand 2, single buffered']
    #allocation8 [shape = 'u8[2048]{0}', space=vmem, size = 0x800, scoped, tag = 'input window, operand 3, single buffered']
    #allocation9 [shape = 's32[1]{0}', space=sflag, size = 0x4, scoped, tag = 'scoped memory for tpu_custom_call.1']
    #allocation10 [shape = 'u8[512]{0}', space=vmem, size = 0x400, scoped, tag = 'output window, operand 0, single buffered']
    %9 = vsyncpa [#allocation3], 0
    %10 = vsyncpa [#allocation6], 0
    %11 = vsyncpa [#allocation9], 0
    %12 = vsyncpa [#allocation4], 0
    // Predicated region
    $region2: #{tpu_custom_call.1} parent=1 // pred_check
      _
    $region3: #{tpu_custom_call.1} parent=1 // pred_check_branch
      %14 = sbr.rel (0) target = $region5
    $region4: #{tpu_custom_call.1} parent=1 // pred_region
      %16 = vsyncadd [#allocation3], 0
      %s18 = sshll.u32 %s0, 4
      %s19 = int_to_ptr.hbm [resolvable:$true] %s18
      %s20 = sshll.u32 [#allocation2], 4
      %s21 = int_to_ptr.vmem [resolvable:$true] %s20
      %23 = dma.hbm_to_vmem [thread:$0]  %s19, 64, %s21, [#allocation3]
    $region5: #{tpu_custom_call.1} parent=1 // pred_fallthru
      _
    // Predicated region
    $region6: #{tpu_custom_call.1} parent=1 // pred_check
      _
    $region7: #{tpu_custom_call.1} parent=1 // pred_check_branch
      %25 = sbr.rel (0) target = $region9
    $region8: #{tpu_custom_call.1} parent=1 // pred_region
      %27 = vsyncadd [#allocation6], 0
      %s29 = sshll.u32 %s1, 4
      %s30 = int_to_ptr.hbm [resolvable:$true] %s29
      %s31 = sshll.u32 [#allocation5], 4
      %s32 = int_to_ptr.vmem [resolvable:$true] %s31
      %34 = dma.hbm_to_vmem [thread:$0]  %s30, 64, %s32, [#allocation6]
    $region9: #{tpu_custom_call.1} parent=1 // pred_fallthru
      _
    // Predicated region
    $region10: #{tpu_custom_call.1} parent=1 // pred_check
      _
    $region11: #{tpu_custom_call.1} parent=1 // pred_check_branch
      %36 = sbr.rel (0) target = $region13
    $region12: #{tpu_custom_call.1} parent=1 // pred_region
      %38 = vsyncadd [#allocation6], 0
      %s39 = sshll.u32 %s2, 4
      %s40 = int_to_ptr.hbm [resolvable:$true] %s39
      %s41 = sshll.u32 [#allocation7], 4
      %s42 = int_to_ptr.vmem [resolvable:$true] %s41
      %47 = dma.hbm_to_vmem [thread:$0]  %s40, 256, %s42, [#allocation6], 128, 128, 8
    $region13: #{tpu_custom_call.1} parent=1 // pred_fallthru
      _
    // Predicated region
    $region14: #{tpu_custom_call.1} parent=1 // pred_check
      _
    $region15: #{tpu_custom_call.1} parent=1 // pred_check_branch
      %49 = sbr.rel (0) target = $region17
    $region16: #{tpu_custom_call.1} parent=1 // pred_region
      %51 = vsyncadd [#allocation9], 0
      %s53 = sshll.u32 %s3, 4
      %s54 = int_to_ptr.hbm [resolvable:$true] %s53
      %s55 = sshll.u32 [#allocation8], 4
      %s56 = int_to_ptr.vmem [resolvable:$true] %s55
      %58 = dma.hbm_to_vmem [thread:$0]  %s54, 64, %s56, [#allocation9]
    $region17: #{tpu_custom_call.1} parent=1 // pred_fallthru
      _
    // Predicated region
    $region18: #{tpu_custom_call.1} parent=1 // pred_check
      _
    $region19: #{tpu_custom_call.1} parent=1 // pred_check_branch
      %60 = sbr.rel (0) target = $region21
    $region20: #{tpu_custom_call.1} parent=1 // pred_region
      %62 = dma.done [#allocation3], 64
    $region21: #{tpu_custom_call.1} parent=1 // pred_fallthru
      _
    // Predicated region
    $region22: #{tpu_custom_call.1} parent=1 // pred_check
      _
    $region23: #{tpu_custom_call.1} parent=1 // pred_check_branch
      %64 = sbr.rel (0) target = $region25
    $region24: #{tpu_custom_call.1} parent=1 // pred_region
      %66 = dma.done [#allocation6], 64
    $region25: #{tpu_custom_call.1} parent=1 // pred_fallthru
      _
    // Predicated region
    $region26: #{tpu_custom_call.1} parent=1 // pred_check
      _
    $region27: #{tpu_custom_call.1} parent=1 // pred_check_branch
      %68 = sbr.rel (0) target = $region29
    $region28: #{tpu_custom_call.1} parent=1 // pred_region
      %70 = dma.done [#allocation6], 256
    $region29: #{tpu_custom_call.1} parent=1 // pred_fallthru
      _
    // Predicated region
    $region30: #{tpu_custom_call.1} parent=1 // pred_check
      _
    $region31: #{tpu_custom_call.1} parent=1 // pred_check_branch
      %72 = sbr.rel (0) target = $region33
    $region32: #{tpu_custom_call.1} parent=1 // pred_region
      %74 = dma.done [#allocation9], 64
    $region33: #{tpu_custom_call.1} parent=1 // pred_fallthru
      _
    %v75 = vld [vmem:[#allocation2] sm:$0xf]
    %v76 = vunpack.c.l.bf16 %v75
    %v77 = vld [vmem:[#allocation5] sm:$0xf]
    %v78 = vunpack.c.l.bf16 %v77
    %v79 = vld [vmem:[#allocation7] sm:$0xff]
    %v80 = vld [vmem:[#allocation7 + $0x8] sm:$0xff]
    %v81 = vld [vmem:[#allocation8] sm:$0x1]
    %v82 = vld [vmem:[#allocation8 + $0x1] sm:$0x1]
    %v83 = vld [vmem:[#allocation8 + $0x2] sm:$0x1]
    %v84 = vperm.slane %v82, 0
    %vm85 = vcmask 130048
    %v87 = vsel %vm85, %v76, 0
    %89 = vmatpush.msra.mxu0 0.0
    %90 = vmatpush.msra.mxu0 0.0
    %91 = vmatpush.msra.mxu0 0.0
    %92 = vmatpush.msra.mxu0 0.0
    %93 = vmatpush.msra.mxu0 0.0
    %94 = vmatpush.msra.mxu0 0.0
    %95 = vmatpush.msra.mxu0 0.0
    %96 = vmatpush.msra.mxu0 0.0
    %97 = vmatpush.msra.mxu0 0.0
    %98 = vmatpush.msra.mxu0 0.0
    %99 = vmatpush.msra.mxu0 0.0
    %100 = vmatpush.msra.mxu0 0.0
    %101 = vmatpush.msra.mxu0 0.0
    %102 = vmatpush.msra.mxu0 0.0
    %103 = vmatpush.msra.mxu0 %v80
    %104 = vmatpush.msra.mxu0 %v79
    %105 = vmatmul.f32.gmra.mxu0 %v87
    %v106 = vpop.f32.mrf.mxu0
    %v107 = vadd.f32 %v84, %v106
    %108 = vdwg.mxu0
    %v109 = vmul.f32 %v107, %v78
    %v110 = vperm.slane %v81, 0
    %v111 = vmul.f32 %v76, %v110
    %v112 = vadd.f32 %v109, %v111
    %v113 = vperm.slane %v83, 0
    %v114 = vadd.f32 %v112, %v113
    %v115 = vsel %vm85, %v114, 0.0
    %116 = vadd.xlane.f32.xlu0 %v115
    %v117 = vpop.xlane.xlu0 %116
    %v119 = vlaneseq
    %v120 = vand.u32 %v119, 127
    %v121 = vperm.slane %v117, %v120
    %vm123 = vcmask 57344
    %124 = vst.msk [vmem:[#allocation10] sm:$0x1] %vm123, %v121
    // Predicated region
    $region34: #{tpu_custom_call.1} parent=1 // pred_check
      _
    $region35: #{tpu_custom_call.1} parent=1 // pred_check_branch
      %126 = sbr.rel (0) target = $region37
    $region36: #{tpu_custom_call.1} parent=1 // pred_region
      %128 = vsyncadd [#allocation4], 0
      %s130 = sshll.u32 [#allocation10], 4
      %s131 = int_to_ptr.vmem [resolvable:$true] %s130
      %s132 = sshll.u32 %s4, 4
      %s133 = int_to_ptr.hbm [resolvable:$true] %s132
      %135 = dma.vmem_to_hbm [thread:$0]  %s131, 16, %s133, [#allocation4]
    $region37: #{tpu_custom_call.1} parent=1 // pred_fallthru
      _
    // Predicated region
    $region38: #{tpu_custom_call.1} parent=1 // pred_check
      _
    $region39: #{tpu_custom_call.1} parent=1 // pred_check_branch
      %137 = sbr.rel (0) target = $region41
    $region40: #{tpu_custom_call.1} parent=1 // pred_region
      %139 = dma.done [#allocation4], 16
    $region41: #{tpu_custom_call.1} parent=1 // pred_fallthru
      _
    %140 = vsyncpa [#allocation3], 1
    %141 = vsyncpa [#allocation6], 1
    %142 = vsyncpa [#allocation9], 1
    %143 = vsyncpa [#allocation4], 1

</llo_original>
